<compile_context>
chip_gen: v5e
topology: v5e:2x2
jax: 0.10.0
libtpu: 0.0.40
codegen_flags: <defaults>
</compile_context>

<pallas_src>
import functools

import jax
import jax.numpy as jnp
from jax.experimental import pallas as pl
from jax.experimental.pallas import tpu as pltpu

IN_DIM = 10
HID_DIM = 5
OUT_DIM = 2


def _round_up(n, m):
    return pl.cdiv(n, m) * m


def mlp_kernel(x_ref, w1_ref, b1_ref, w2_ref, b2_ref, o_ref):
    # x_ref : (IN, TB)   bf16   -- batch along lanes (lane-dense)
    # w1_ref: (HID, IN)  bf16   -- PyTorch (out_features, in_features) layout
    # b1_ref: (HID, 1)   f32
    # w2_ref: (OUT, HID) bf16
    # b2_ref: (OUT, 1)   f32
    # o_ref : (OUT, TB)  f32
    h = jnp.dot(w1_ref[...], x_ref[...], preferred_element_type=jnp.float32)
    h = jnp.maximum(h + b1_ref[...], 0.0)                 # bias + ReLU in f32
    y = jnp.dot(w2_ref[...], h.astype(w2_ref.dtype),
                preferred_element_type=jnp.float32)
    o_ref[...] = (y + b2_ref[...]).astype(o_ref.dtype)


@functools.partial(jax.jit, static_argnames=("block_b",))
def net_forward(x, w1, b1, w2, b2, *, block_b=4096):
    """Forward pass of Net.

    x : (B, IN_DIM) f32.  Weights/biases in PyTorch nn.Linear layout:
    w1:(HID, IN), b1:(HID,), w2:(OUT, HID), b2:(OUT,).  Returns (B, OUT) f32.
    """
    B = x.shape[0]
    # Batch tile: as large as configured, lane-aligned (multiple of 128).
    TB = int(min(block_b, _round_up(B, 128)))
    B_pad = int(_round_up(B, TB))

    # Feature-major / lane-dense: batch -> lanes.
    xt = jnp.transpose(x)                                  # (IN, B)
    if B_pad != B:
        xt = jnp.pad(xt, ((0, 0), (0, B_pad - B)))

    # bf16 for the mem-bound input stream; MXU still accumulates in f32.
    cdt = jnp.bfloat16
    xt = xt.astype(cdt)
    w1c = w1.astype(cdt)
    w2c = w2.astype(cdt)
    b1c = b1.reshape(HID_DIM, 1).astype(jnp.float32)
    b2c = b2.reshape(OUT_DIM, 1).astype(jnp.float32)

    out_t = pl.pallas_call(
        mlp_kernel,
        out_shape=jax.ShapeDtypeStruct((OUT_DIM, B_pad), jnp.float32),
        grid=(B_pad // TB,),
        in_specs=[
            pl.BlockSpec((IN_DIM, TB), lambda i: (0, i)),        # x tile (steps)
            pl.BlockSpec((HID_DIM, IN_DIM), lambda i: (0, 0)),   # W1 resident
            pl.BlockSpec((HID_DIM, 1), lambda i: (0, 0)),        # b1 resident
            pl.BlockSpec((OUT_DIM, HID_DIM), lambda i: (0, 0)),  # W2 resident
            pl.BlockSpec((OUT_DIM, 1), lambda i: (0, 0)),        # b2 resident
        ],
        out_specs=pl.BlockSpec((OUT_DIM, TB), lambda i: (0, i)),
        compiler_params=pltpu.CompilerParams(
            # Batch tiles are independent -> shard across TCs on v7x megacore.
            dimension_semantics=("parallel",),
        ),
    )(xt, w1c, b1c, w2c, b2c)

    return jnp.transpose(out_t)[:B]                        # (B, OUT)


def init_params(key):
    """Deterministic init mimicking PyTorch Linear's U(-1/sqrt(fan_in), ...).
    Stored in PyTorch layout: weight (out_features, in_features), bias (out,)."""
    k1, k2, k3, k4 = jax.random.split(key, 4)
    bound1 = 1.0 / (IN_DIM ** 0.5)
    bound2 = 1.0 / (HID_DIM ** 0.5)
    w1 = jax.random.uniform(k1, (HID_DIM, IN_DIM), jnp.float32, -bound1, bound1)
    b1 = jax.random.uniform(k2, (HID_DIM,), jnp.float32, -bound1, bound1)
    w2 = jax.random.uniform(k3, (OUT_DIM, HID_DIM), jnp.float32, -bound2, bound2)
    b2 = jax.random.uniform(k4, (OUT_DIM,), jnp.float32, -bound2, bound2)
    return w1, b1, w2, b2


def _reference_bf16(x, w1, b1, w2, b2):
    """Plain-JAX reference replicating the kernel's numerics (bf16 inputs,
    f32 accumulation, bias/ReLU in f32)."""
    f = lambda a: a.astype(jnp.bfloat16).astype(jnp.float32)
    h = jnp.maximum(f(x) @ f(w1).T + b1, 0.0)
    return f(h) @ f(w2).T + b2


if __name__ == "__main__":
    key = jax.random.PRNGKey(0)
    k_params, k_x = jax.random.split(key)
    w1, b1, w2, b2 = init_params(k_params)

    B = 8
    x = jax.random.normal(k_x, (B, IN_DIM), jnp.float32)

    out = jax.block_until_ready(net_forward(x, w1, b1, w2, b2))
    assert out.shape == (B, OUT_DIM)

    # Check against a reference with matching (bf16-input) numerics.
    ref = _reference_bf16(x, w1, b1, w2, b2)
    assert jnp.allclose(out, ref, atol=1e-2, rtol=1e-2), float(
        jnp.max(jnp.abs(out - ref)))

    # Loose sanity check vs. the pure-f32 math of the PyTorch module.
    ref_f32 = jnp.maximum(x @ w1.T + b1, 0.0) @ w2.T + b2
    assert jnp.allclose(out, ref_f32, atol=1e-1, rtol=1e-1)

    # Exercise the padding / non-128-multiple batch path as well.
    B2 = 200
    x2 = jax.random.normal(jax.random.PRNGKey(1), (B2, IN_DIM), jnp.float32)
    out2 = jax.block_until_ready(net_forward(x2, w1, b1, w2, b2))
    assert out2.shape == (B2, OUT_DIM)
    ref2 = _reference_bf16(x2, w1, b1, w2, b2)
    assert jnp.allclose(out2, ref2, atol=1e-2, rtol=1e-2)

    print("KERNEL_OK")
</pallas_src>

<mosaic_0001>
module attributes {stable_mosaic.version = 11 : i64} {
  func.func @mlp_kernel(%arg0: i32, %arg1: memref<10x128xbf16, #tpu.memory_space<vmem>>, %arg2: memref<5x10xbf16, #tpu.memory_space<vmem>>, %arg3: memref<5x1xf32, #tpu.memory_space<vmem>>, %arg4: memref<2x5xbf16, #tpu.memory_space<vmem>>, %arg5: memref<2x1xf32, #tpu.memory_space<vmem>>, %arg6: memref<2x128xf32, #tpu.memory_space<vmem>>) attributes {dimension_semantics = [#tpu.dimension_semantics<parallel>], iteration_bounds = array<i64: 1>, scalar_prefetch = 0 : i64, scratch_operands = 0 : i64, tpu.core_type = #tpu.core_type<tc>, window_params = [{transform_indices = @transform_0, window_bounds = array<i64: 10, 128>}, {pipeline_mode = #tpu.pipeline_mode<synchronous>, transform_indices = @transform_1, window_bounds = array<i64: 5, 10>}, {pipeline_mode = #tpu.pipeline_mode<synchronous>, transform_indices = @transform_2, window_bounds = array<i64: 5, 1>}, {pipeline_mode = #tpu.pipeline_mode<synchronous>, transform_indices = @transform_3, window_bounds = array<i64: 2, 5>}, {pipeline_mode = #tpu.pipeline_mode<synchronous>, transform_indices = @transform_4, window_bounds = array<i64: 2, 1>}, {transform_indices = @transform_5, window_bounds = array<i64: 2, 128>}]} {
    %c0 = arith.constant 0 : index
    %c0_0 = arith.constant 0 : index
    %0 = vector.load %arg2[%c0, %c0_0] : memref<5x10xbf16, #tpu.memory_space<vmem>>, vector<5x10xbf16>
    %c0_1 = arith.constant 0 : index
    %c0_2 = arith.constant 0 : index
    %1 = vector.load %arg1[%c0_1, %c0_2] : memref<10x128xbf16, #tpu.memory_space<vmem>>, vector<10x128xbf16>
    %cst = arith.constant dense<0.000000e+00> : vector<5x128xf32>
    %2 = tpu.matmul %0, %1, %cst {dimension_numbers = #tpu.dot_dimension_numbers<[1], [0], [0], [1], [0, 0, 1, 1], [], []>} : vector<5x10xbf16>, vector<10x128xbf16>, vector<5x128xf32> -> vector<5x128xf32>
    %c0_3 = arith.constant 0 : index
    %c0_4 = arith.constant 0 : index
    %3 = vector.load %arg3[%c0_3, %c0_4] : memref<5x1xf32, #tpu.memory_space<vmem>>, vector<5x1xf32>
    %4 = vector.broadcast %3 : vector<5x1xf32> to vector<5x128xf32>
    %5 = arith.addf %2, %4 : vector<5x128xf32>
    %cst_5 = arith.constant 0.000000e+00 : f32
    %6 = vector.broadcast %cst_5 : f32 to vector<5x128xf32>
    %7 = arith.maximumf %5, %6 : vector<5x128xf32>
    %c0_6 = arith.constant 0 : index
    %c0_7 = arith.constant 0 : index
    %8 = vector.load %arg4[%c0_6, %c0_7] : memref<2x5xbf16, #tpu.memory_space<vmem>>, vector<2x5xbf16>
    %9 = arith.truncf %7 : vector<5x128xf32> to vector<5x128xbf16>
    %cst_8 = arith.constant dense<0.000000e+00> : vector<2x128xf32>
    %10 = tpu.matmul %8, %9, %cst_8 {dimension_numbers = #tpu.dot_dimension_numbers<[1], [0], [0], [1], [0, 0, 1, 1], [], []>} : vector<2x5xbf16>, vector<5x128xbf16>, vector<2x128xf32> -> vector<2x128xf32>
    %c0_9 = arith.constant 0 : index
    %c0_10 = arith.constant 0 : index
    %11 = vector.load %arg5[%c0_9, %c0_10] : memref<2x1xf32, #tpu.memory_space<vmem>>, vector<2x1xf32>
    %12 = vector.broadcast %11 : vector<2x1xf32> to vector<2x128xf32>
    %13 = arith.addf %10, %12 : vector<2x128xf32>
    %c0_11 = arith.constant 0 : index
    %c0_12 = arith.constant 0 : index
    %14 = vector.load %arg6[%c0_11, %c0_12] : memref<2x128xf32, #tpu.memory_space<vmem>>, vector<2x128xf32>
    tpu.vector_store %arg6[%c0_11, %c0_12], %13 {strides = array<i32>} : memref<2x128xf32, #tpu.memory_space<vmem>>, vector<2x128xf32>,
    return
  }
  func.func @transform_0(%arg0: i32) -> (i32, i32) {
    %c0_i32 = arith.constant 0 : i32
    %c0_i32_0 = arith.constant 0 : i32
    return %c0_i32, %arg0 : i32, i32
  }
  func.func @transform_1(%arg0: i32) -> (i32, i32) {
    %c0_i32 = arith.constant 0 : i32
    %c0_i32_0 = arith.constant 0 : i32
    %c0_i32_1 = arith.constant 0 : i32
    return %c0_i32, %c0_i32_0 : i32, i32
  }
  func.func @transform_2(%arg0: i32) -> (i32, i32) {
    %c0_i32 = arith.constant 0 : i32
    %c0_i32_0 = arith.constant 0 : i32
    %c0_i32_1 = arith.constant 0 : i32
    return %c0_i32, %c0_i32_0 : i32, i32
  }
  func.func @transform_3(%arg0: i32) -> (i32, i32) {
    %c0_i32 = arith.constant 0 : i32
    %c0_i32_0 = arith.constant 0 : i32
    %c0_i32_1 = arith.constant 0 : i32
    return %c0_i32, %c0_i32_0 : i32, i32
  }
  func.func @transform_4(%arg0: i32) -> (i32, i32) {
    %c0_i32 = arith.constant 0 : i32
    %c0_i32_0 = arith.constant 0 : i32
    %c0_i32_1 = arith.constant 0 : i32
    return %c0_i32, %c0_i32_0 : i32, i32
  }
  func.func @transform_5(%arg0: i32) -> (i32, i32) {
    %c0_i32 = arith.constant 0 : i32
    %c0_i32_0 = arith.constant 0 : i32
    return %c0_i32, %arg0 : i32, i32
  }
}

</mosaic_0001>

<llo_original>
// kernel: net_forward.1
$region0: #{net_forward.1}
  #allocation0 [shape = 'u32[]', space=smem, size = 0x4, offset = 0x4, fixed_abs, tag = 'smem constant byte address 0x4 - core index']
  #allocation1 [shape = 'u32[72,128]{1,0:T(1,128)}', space=vmem, size = 0x9000, scoped, tag = 'internal scratch']
  %s0 = inlined_call_operand.vmem [shape: bf16[10,128], index: 0, kind: input, shape index: {}]
  %s1 = inlined_call_operand.vmem [shape: bf16[5,10], index: 1, kind: input, shape index: {}]
  %s2 = inlined_call_operand.vmem [shape: f32[5,1], index: 2, kind: input, shape index: {}]
  %s3 = inlined_call_operand.vmem [shape: bf16[2,5], index: 3, kind: input, shape index: {}]
  %s4 = inlined_call_operand.vmem [shape: f32[2,1], index: 4, kind: input, shape index: {}]
  %s5 = inlined_call_operand.hbm [shape: f32[2,128], index: 5, kind: output, shape index: {}]
  %s6 = sld [smem:[#allocation0]]
  $region30: #{net_forward.1} parent=0
    _
  %s8 = ssub.s32 1, %s6
  %s9 = scalar_select 0, %s8, %s6
  $region1: #{net_forward.1} parent=0
    #allocation2 [shape = 'u8[1024]{0}', space=vmem, size = 0x400, scoped, tag = 'output window, operand 0, single buffered']
    #allocation3 [shape = 's32[1]{0}', space=sflag, size = 0x4, scoped, tag = 'scoped memory for net_forward.1']
    %10 = vsyncpa [#allocation3], 0
    // Predicated region
    $region2: #{net_forward.1} parent=1 // pred_check
      _
    $region3: #{net_forward.1} parent=1 // pred_check_branch
      %12 = sbr.rel (0) target = $region5
    $region4: #{net_forward.1} parent=1 // pred_region
      _
    $region5: #{net_forward.1} parent=1 // pred_fallthru
      _
    // Predicated region
    $region6: #{net_forward.1} parent=1 // pred_check
      _
    $region7: #{net_forward.1} parent=1 // pred_check_branch
      %14 = sbr.rel (0) target = $region9
    $region8: #{net_forward.1} parent=1 // pred_region
      _
    $region9: #{net_forward.1} parent=1 // pred_fallthru
      _
    // Predicated region
    $region10: #{net_forward.1} parent=1 // pred_check
      _
    $region11: #{net_forward.1} parent=1 // pred_check_branch
      %16 = sbr.rel (0) target = $region13
    $region12: #{net_forward.1} parent=1 // pred_region
      _
    $region13: #{net_forward.1} parent=1 // pred_fallthru
      _
    // Predicated region
    $region14: #{net_forward.1} parent=1 // pred_check
      _
    $region15: #{net_forward.1} parent=1 // pred_check_branch
      %18 = sbr.rel (0) target = $region17
    $region16: #{net_forward.1} parent=1 // pred_region
      _
    $region17: #{net_forward.1} parent=1 // pred_fallthru
      _
    // Predicated region
    $region18: #{net_forward.1} parent=1 // pred_check
      _
    $region19: #{net_forward.1} parent=1 // pred_check_branch
      %20 = sbr.rel (0) target = $region21
    $region20: #{net_forward.1} parent=1 // pred_region
      _
    $region21: #{net_forward.1} parent=1 // pred_fallthru
      _
    %v22 = vld [vmem:[%s1] sm:$0x7]
    %v23 = vld [vmem:[%s0] sm:$0xf]
    %v24 = vld [vmem:[%s0 + $0x4] sm:$0x1]
    %v25 = vld [vmem:[%s2] sm:$0x1f]
    %27 = vset.pattern.permute.xlu0 0
    %28 = vperm.xlu0 %27, %v25
    %v29 = vpop.permute.xlu0 %28
    %v33 = vunpack.c.l.b16 %v23
    %v34 = vunpack.c.l.b16 %v24
    %v35 = vpack.c.b16 %v34, %v33
    %vm36 = vcmask 80896
    %v38 = vsel %vm36, %v22, 0
    %vm40 = vcmask 1044480
    %v42 = vsel %vm40, %v35, 0
    %44 = vmatpush.bf16.msra.mxu0 0
    %45 = vmatpush.bf16.msra.mxu0 0
    %46 = vmatpush.bf16.msra.mxu0 0
    %47 = vmatpush.bf16.msra.mxu0 0
    %48 = vmatpush.bf16.msra.mxu0 0
    %49 = vmatpush.bf16.msra.mxu0 0
    %50 = vmatpush.bf16.msra.mxu0 0
    %51 = vmatpush.bf16.msra.mxu0 %v42
    %52 = vmatmul.bf16.gmra.mxu0 %v38
    %v53 = vpop.f32.mrf.mxu0
    %v54 = vadd.f32 %v29, %v53
    %v55 = vpop.f32.mrf.mxu0
    %56 = vdwg.mxu0
    %v57 = vmax.f32 %v54, 0.0
    %v58 = vld [vmem:[%s3] sm:$0x1]
    %v59 = vpack.c.bf16 %v57, %v57
    %v60 = vld [vmem:[%s4] sm:$0x3]
    %62 = vset.pattern.permute.xlu0 0
    %63 = vperm.xlu0 %62, %v60
    %v64 = vpop.permute.xlu0 %63
    %vm66 = vcmask 39936
    %v68 = vsel %vm66, %v58, 0
    %vm70 = vcmask 1041408
    %vm71 = vcmask 1042432
    %v72 = vsel %vm70, 4294967295, 65535
    %v73 = vsel %vm71, %v72, 0
    %v75 = vand.u32 %v59, %v73
    %77 = vmatpush.bf16.msra.mxu0 0
    %78 = vmatpush.bf16.msra.mxu0 0
    %79 = vmatpush.bf16.msra.mxu0 0
    %80 = vmatpush.bf16.msra.mxu0 0
    %81 = vmatpush.bf16.msra.mxu0 0
    %82 = vmatpush.bf16.msra.mxu0 0
    %83 = vmatpush.bf16.msra.mxu0 0
    %84 = vmatpush.bf16.msra.mxu0 %v75
    %85 = vmatmul.bf16.gmra.mxu0 %v68
    %v86 = vpop.f32.mrf.mxu0
    %v87 = vadd.f32 %v64, %v86
    %v88 = vpop.f32.mrf.mxu0
    %89 = vdwg.mxu0
    %90 = vst [vmem:[#allocation2] sm:$0x3] %v87
    // Predicated region
    $region22: #{net_forward.1} parent=1 // pred_check
      _
    $region23: #{net_forward.1} parent=1 // pred_check_branch
      %92 = sbr.rel (0) target = $region25
    $region24: #{net_forward.1} parent=1 // pred_region
      %94 = vsyncadd [#allocation3], 0
      %s96 = sshll.u32 [#allocation2], 4
      %s97 = int_to_ptr.vmem [resolvable:$true] %s96
      %s98 = sshll.u32 %s5, 4
      %s99 = int_to_ptr.hbm [resolvable:$true] %s98
      %101 = dma.vmem_to_hbm [thread:$0]  %s97, 32, %s99, [#allocation3]
    $region25: #{net_forward.1} parent=1 // pred_fallthru
      _
    // Predicated region
    $region26: #{net_forward.1} parent=1 // pred_check
      _
    $region27: #{net_forward.1} parent=1 // pred_check_branch
      %103 = sbr.rel (0) target = $region29
    $region28: #{net_forward.1} parent=1 // pred_region
      %105 = dma.done [#allocation3], 32
    $region29: #{net_forward.1} parent=1 // pred_fallthru
      _
    %106 = vsyncpa [#allocation3], 1

</llo_original>
